<compile_context>
chip_gen: v7x
topology: tpu7x:2x2x1
jax: 0.10.0
libtpu: 0.0.40
codegen_flags: <defaults>
</compile_context>

<pallas_src>
import math

import jax
import jax.numpy as jnp
from jax.experimental import pallas as pl
from jax.experimental.pallas import tpu as pltpu


def make_divisible(v, divisor):
    return math.ceil(v / divisor) * divisor


def _se_kernel(x_ref, w1t_ref, b1_ref, w2t_ref, b2_ref, o_ref):
    """One grid step: an (nb, C*HW) row-slab of the (N, C*HW) input view.

    x_ref, o_ref : (nb, C*HW)  nb batch rows; lane axis = all C channels' HW.
    w1t_ref      : (C, Cs) f32  fc1 weight, transposed host-side (w1t[c, j] = w1[j, c])
    b1_ref       : (1, Cs) f32
    w2t_ref      : (Cs, C) f32  fc2 weight, transposed host-side
    b2_ref       : (1, C)  f32
    """
    c_in, c_sq = w1t_ref.shape
    hw = x_ref.shape[1] // c_in
    inv_hw = jnp.float32(1.0 / hw)            # compile-time constant, no divide

    # Hoist the (tiny) parameter loads once per block.
    w1t = w1t_ref[...]                        # (C, Cs)
    w2t = w2t_ref[...]                        # (Cs, C)
    b1 = b1_ref[...]                          # (1, Cs)
    b2 = b2_ref[...]                          # (1, C)

    # ---- Squeeze + fc1 (folded): s1_pre[n, j] = sum_c mean_c[n] * w1[j, c].
    # The loop is over the compile-time channel count (C=4), NOT over batch
    # rows; each channel slab is consumed by its lane-reduce immediately, so
    # no large temporaries stay live across iterations.  The outer-product FMA
    # keeps the fc entirely on the VPU (C, Cs <= 8: an MXU dot would use <0.1%
    # of the array and just pay push/drain overhead).
    s1 = None
    for c in range(c_in):
        xc = x_ref[:, c * hw:(c + 1) * hw].astype(jnp.float32)     # (nb, HW)
        mean_c = jnp.sum(xc, axis=-1, keepdims=True) * inv_hw      # (nb, 1)
        term = mean_c * w1t[c:c + 1, :]                            # (nb, Cs)
        s1 = term if s1 is None else s1 + term
    s1 = jnp.maximum(s1 + b1, 0.0)                                 # (nb, Cs) ReLU

    # ---- fc2 + hardsigmoid, same outer-product form (Cs = 8 terms).
    s2 = None
    for j in range(c_sq):
        term = s1[:, j:j + 1] * w2t[j:j + 1, :]                    # (nb, C)
        s2 = term if s2 is None else s2 + term
    scale = jnp.clip((s2 + b2) * jnp.float32(1.0 / 6.0) + 0.5, 0.0, 1.0)  # (nb, C)

    # ---- Excite: per-channel lane-dense scale-and-store.  Stores are dense
    # (full nb sublane rows, HW a multiple of 128 lanes here).  For bf16
    # inputs the multiply stays in bf16 (pool/fc above were already f32).
    for c in range(c_in):
        sl = slice(c * hw, (c + 1) * hw)
        xc = x_ref[:, sl]
        sc = scale[:, c:c + 1].astype(xc.dtype)
        o_ref[:, sl] = (sc * xc).astype(o_ref.dtype)


def _pick_block_rows(n_rows, row_bytes, sublane, vmem_budget, overhead):
    """Rows per grid step: tile-aligned, >= 2 steps when possible, ~<=8MiB blocks."""
    per_block_cap = max(sublane * row_bytes, (vmem_budget - overhead) // 4)
    target_rows = max(1, min(8 << 20, per_block_cap) // row_bytes)
    if n_rows >= 2 * sublane:
        nb_max = min(n_rows // 2, max(sublane, target_rows))
        nb_max -= nb_max % sublane
        for nb in range(nb_max, 0, -sublane):
            if n_rows % nb == 0:
                return nb          # sublane-aligned, >= 2 grid steps
    # Tiny/awkward N: one full-extent block (tile-rule compliant; whole
    # problem is only a few KiB in this regime, so a single step is cheap).
    return n_rows


def squeeze_excitation(x, w1, b1, w2, b2):
    """x: (N, C, H, W); w1: (Cs, C); b1: (Cs,); w2: (C, Cs); b2: (C,)."""
    N, C, H, W = x.shape
    HW = H * W
    Cs = w1.shape[0]
    L = C * HW
    itemsize = jnp.dtype(x.dtype).itemsize

    # ---- Host-side layout plumbing (free reshapes / tiny transposes).
    xr = x.reshape(N, L)
    w1t = jnp.asarray(w1, jnp.float32).T            # (C, Cs)
    w2t = jnp.asarray(w2, jnp.float32).T            # (Cs, C)
    b1r = jnp.asarray(b1, jnp.float32).reshape(1, Cs)
    b2r = jnp.asarray(b2, jnp.float32).reshape(1, C)

    # ---- Generation-aware VMEM budget (v7x: 64 MiB physical -> 48 MiB cap;
    # v5e/v6e: 128 MiB -> ~96 MiB usable for blocks).
    try:
        vmem_cap = int(getattr(pltpu.get_tpu_info(), "vmem_capacity_bytes",
                               128 << 20))
    except Exception:
        vmem_cap = 128 << 20
    vmem_budget = (48 << 20) if vmem_cap <= (64 << 20) else (96 << 20)

    # ---- Block sizing with layout padding (sublane tile + 128-lane rounding),
    # counting double-buffered in + out blocks (4x) plus params + headroom.
    sublane = max(8, 32 // itemsize)                # 8 f32 / 16 bf16 / 32 int8
    row_bytes = (-(-L // 128) * 128) * itemsize
    param_bytes = 4 * (w1t.size + w2t.size + b1r.size + b2r.size)
    overhead = int(param_bytes) + (2 << 20)

    nb = int(_pick_block_rows(N, row_bytes, sublane, vmem_budget, overhead))
    grid_n = N // nb                                # exact by construction

    block_bytes = (-(-nb // sublane) * sublane) * row_bytes
    vmem_limit = int(max(16 << 20, min(4 * block_bytes + overhead, vmem_budget)))

    out = pl.pallas_call(
        _se_kernel,
        out_shape=jax.ShapeDtypeStruct((N, L), x.dtype),
        grid=(grid_n,),
        in_specs=[
            pl.BlockSpec((nb, L), lambda i: (i, 0)),
            pl.BlockSpec((C, Cs), lambda i: (0, 0)),
            pl.BlockSpec((1, Cs), lambda i: (0, 0)),
            pl.BlockSpec((Cs, C), lambda i: (0, 0)),
            pl.BlockSpec((1, C), lambda i: (0, 0)),
        ],
        out_specs=pl.BlockSpec((nb, L), lambda i: (i, 0)),
        compiler_params=pltpu.CompilerParams(
            dimension_semantics=("parallel",),
            vmem_limit_bytes=vmem_limit,
        ),
    )(xr, w1t, b1r, w2t, b2r)
    return out.reshape(N, C, H, W)


def _reference(x, w1, b1, w2, b2):
    pooled = jnp.mean(x, axis=(2, 3))                                   # (N, C)
    s1 = jnp.maximum(pooled @ w1.T + b1[None, :], 0.0)                  # (N, Cs)
    s2 = s1 @ w2.T + b2[None, :]                                        # (N, C)
    scale = jnp.clip((s2 + 3.0) / 6.0, 0.0, 1.0)
    return scale[:, :, None, None] * x


if __name__ == "__main__":
    # Module config: in_channels=4, squeeze_factor=4 -> squeeze_channel = 8.
    in_channels = 4
    squeeze_factor = 4
    squeeze_channel = make_divisible(in_channels // squeeze_factor, 8)   # = 8

    N, C, H, W = 2, in_channels, 16, 16

    key = jax.random.PRNGKey(0)
    kx, kw1, kb1, kw2, kb2 = jax.random.split(key, 5)

    x = jax.random.normal(kx, (N, C, H, W), dtype=jnp.float32)
    # fc1: Conv2d(C, Cs, 1) -> weight (Cs, C, 1, 1) collapsed to (Cs, C)
    w1 = jax.random.normal(kw1, (squeeze_channel, in_channels), jnp.float32) * 0.5
    b1 = jax.random.normal(kb1, (squeeze_channel,), jnp.float32) * 0.1
    # fc2: Conv2d(Cs, C, 1) -> weight (C, Cs, 1, 1) collapsed to (C, Cs)
    w2 = jax.random.normal(kw2, (in_channels, squeeze_channel), jnp.float32) * 0.5
    b2 = jax.random.normal(kb2, (in_channels,), jnp.float32) * 0.1

    out = squeeze_excitation(x, w1, b1, w2, b2)
    out = jax.block_until_ready(out)

    ref = _reference(x, w1, b1, w2, b2)
    assert out.shape == (N, C, H, W)
    err = float(jnp.max(jnp.abs(out - ref)))
    assert jnp.allclose(out, ref, atol=1e-5, rtol=1e-5), err

    print("KERNEL_OK")
</pallas_src>

<mosaic_0001>
module attributes {stable_mosaic.version = 11 : i64} {
  func.func @_se_kernel(%arg0: i32, %arg1: memref<2x1024xf32, #tpu.memory_space<vmem>>, %arg2: memref<4x8xf32, #tpu.memory_space<vmem>>, %arg3: memref<1x8xf32, #tpu.memory_space<vmem>>, %arg4: memref<8x4xf32, #tpu.memory_space<vmem>>, %arg5: memref<1x4xf32, #tpu.memory_space<vmem>>, %arg6: memref<2x1024xf32, #tpu.memory_space<vmem>>) attributes {dimension_semantics = [#tpu.dimension_semantics<parallel>], iteration_bounds = array<i64: 1>, scalar_prefetch = 0 : i64, scratch_operands = 0 : i64, tpu.core_type = #tpu.core_type<tc>, window_params = [{transform_indices = @transform_0, window_bounds = array<i64: 2, 1024>}, {pipeline_mode = #tpu.pipeline_mode<synchronous>, transform_indices = @transform_1, window_bounds = array<i64: 4, 8>}, {pipeline_mode = #tpu.pipeline_mode<synchronous>, transform_indices = @transform_2, window_bounds = array<i64: 1, 8>}, {pipeline_mode = #tpu.pipeline_mode<synchronous>, transform_indices = @transform_3, window_bounds = array<i64: 8, 4>}, {pipeline_mode = #tpu.pipeline_mode<synchronous>, transform_indices = @transform_4, window_bounds = array<i64: 1, 4>}, {transform_indices = @transform_5, window_bounds = array<i64: 2, 1024>}]} {
    %c0 = arith.constant 0 : index
    %c0_0 = arith.constant 0 : index
    %0 = vector.load %arg2[%c0, %c0_0] : memref<4x8xf32, #tpu.memory_space<vmem>>, vector<4x8xf32>
    %c0_1 = arith.constant 0 : index
    %c0_2 = arith.constant 0 : index
    %1 = vector.load %arg4[%c0_1, %c0_2] : memref<8x4xf32, #tpu.memory_space<vmem>>, vector<8x4xf32>
    %c0_3 = arith.constant 0 : index
    %c0_4 = arith.constant 0 : index
    %2 = vector.load %arg3[%c0_3, %c0_4] : memref<1x8xf32, #tpu.memory_space<vmem>>, vector<1x8xf32>
    %c0_5 = arith.constant 0 : index
    %c0_6 = arith.constant 0 : index
    %3 = vector.load %arg5[%c0_5, %c0_6] : memref<1x4xf32, #tpu.memory_space<vmem>>, vector<1x4xf32>
    %c0_7 = arith.constant 0 : index
    %c0_8 = arith.constant 0 : index
    %4 = vector.load %arg1[%c0_7, %c0_8] : memref<2x1024xf32, #tpu.memory_space<vmem>>, vector<2x256xf32>
    %cst = arith.constant dense<0.000000e+00> : vector<2xf32>
    %5 = vector.multi_reduction <add>, %4, %cst [1] : vector<2x256xf32> to vector<2xf32>
    %6 = vector.shape_cast %5 : vector<2xf32> to vector<2x1xf32>
    %cst_9 = arith.constant 3.906250e-03 : f32
    %7 = vector.broadcast %cst_9 : f32 to vector<2x1xf32>
    %8 = arith.mulf %6, %7 : vector<2x1xf32>
    %9 = vector.extract_strided_slice %0 {offsets = [0, 0], sizes = [1, 8], strides = [1, 1]} : vector<4x8xf32> to vector<1x8xf32>
    %10 = vector.broadcast %8 : vector<2x1xf32> to vector<2x8xf32>
    %11 = vector.broadcast %9 : vector<1x8xf32> to vector<2x8xf32>
    %12 = arith.mulf %10, %11 : vector<2x8xf32>
    %c0_10 = arith.constant 0 : index
    %c256 = arith.constant 256 : index
    %13 = vector.load %arg1[%c0_10, %c256] : memref<2x1024xf32, #tpu.memory_space<vmem>>, vector<2x256xf32>
    %cst_11 = arith.constant dense<0.000000e+00> : vector<2xf32>
    %14 = vector.multi_reduction <add>, %13, %cst_11 [1] : vector<2x256xf32> to vector<2xf32>
    %15 = vector.shape_cast %14 : vector<2xf32> to vector<2x1xf32>
    %cst_12 = arith.constant 3.906250e-03 : f32
    %16 = vector.broadcast %cst_12 : f32 to vector<2x1xf32>
    %17 = arith.mulf %15, %16 : vector<2x1xf32>
    %18 = vector.extract_strided_slice %0 {offsets = [1, 0], sizes = [1, 8], strides = [1, 1]} : vector<4x8xf32> to vector<1x8xf32>
    %19 = vector.broadcast %17 : vector<2x1xf32> to vector<2x8xf32>
    %20 = vector.broadcast %18 : vector<1x8xf32> to vector<2x8xf32>
    %21 = arith.mulf %19, %20 : vector<2x8xf32>
    %22 = arith.addf %12, %21 : vector<2x8xf32>
    %c0_13 = arith.constant 0 : index
    %c512 = arith.constant 512 : index
    %23 = vector.load %arg1[%c0_13, %c512] : memref<2x1024xf32, #tpu.memory_space<vmem>>, vector<2x256xf32>
    %cst_14 = arith.constant dense<0.000000e+00> : vector<2xf32>
    %24 = vector.multi_reduction <add>, %23, %cst_14 [1] : vector<2x256xf32> to vector<2xf32>
    %25 = vector.shape_cast %24 : vector<2xf32> to vector<2x1xf32>
    %cst_15 = arith.constant 3.906250e-03 : f32
    %26 = vector.broadcast %cst_15 : f32 to vector<2x1xf32>
    %27 = arith.mulf %25, %26 : vector<2x1xf32>
    %28 = vector.extract_strided_slice %0 {offsets = [2, 0], sizes = [1, 8], strides = [1, 1]} : vector<4x8xf32> to vector<1x8xf32>
    %29 = vector.broadcast %27 : vector<2x1xf32> to vector<2x8xf32>
    %30 = vector.broadcast %28 : vector<1x8xf32> to vector<2x8xf32>
    %31 = arith.mulf %29, %30 : vector<2x8xf32>
    %32 = arith.addf %22, %31 : vector<2x8xf32>
    %c0_16 = arith.constant 0 : index
    %c768 = arith.constant 768 : index
    %33 = vector.load %arg1[%c0_16, %c768] : memref<2x1024xf32, #tpu.memory_space<vmem>>, vector<2x256xf32>
    %cst_17 = arith.constant dense<0.000000e+00> : vector<2xf32>
    %34 = vector.multi_reduction <add>, %33, %cst_17 [1] : vector<2x256xf32> to vector<2xf32>
    %35 = vector.shape_cast %34 : vector<2xf32> to vector<2x1xf32>
    %cst_18 = arith.constant 3.906250e-03 : f32
    %36 = vector.broadcast %cst_18 : f32 to vector<2x1xf32>
    %37 = arith.mulf %35, %36 : vector<2x1xf32>
    %38 = vector.extract_strided_slice %0 {offsets = [3, 0], sizes = [1, 8], strides = [1, 1]} : vector<4x8xf32> to vector<1x8xf32>
    %39 = vector.broadcast %37 : vector<2x1xf32> to vector<2x8xf32>
    %40 = vector.broadcast %38 : vector<1x8xf32> to vector<2x8xf32>
    %41 = arith.mulf %39, %40 : vector<2x8xf32>
    %42 = arith.addf %32, %41 : vector<2x8xf32>
    %43 = vector.broadcast %2 : vector<1x8xf32> to vector<2x8xf32>
    %44 = arith.addf %42, %43 : vector<2x8xf32>
    %cst_19 = arith.constant 0.000000e+00 : f32
    %45 = vector.broadcast %cst_19 : f32 to vector<2x8xf32>
    %46 = arith.maximumf %44, %45 : vector<2x8xf32>
    %47 = vector.extract_strided_slice %46 {offsets = [0, 0], sizes = [2, 1], strides = [1, 1]} : vector<2x8xf32> to vector<2x1xf32>
    %48 = vector.extract_strided_slice %1 {offsets = [0, 0], sizes = [1, 4], strides = [1, 1]} : vector<8x4xf32> to vector<1x4xf32>
    %49 = vector.broadcast %47 : vector<2x1xf32> to vector<2x4xf32>
    %50 = vector.broadcast %48 : vector<1x4xf32> to vector<2x4xf32>
    %51 = arith.mulf %49, %50 : vector<2x4xf32>
    %52 = vector.extract_strided_slice %46 {offsets = [0, 1], sizes = [2, 1], strides = [1, 1]} : vector<2x8xf32> to vector<2x1xf32>
    %53 = vector.extract_strided_slice %1 {offsets = [1, 0], sizes = [1, 4], strides = [1, 1]} : vector<8x4xf32> to vector<1x4xf32>
    %54 = vector.broadcast %52 : vector<2x1xf32> to vector<2x4xf32>
    %55 = vector.broadcast %53 : vector<1x4xf32> to vector<2x4xf32>
    %56 = arith.mulf %54, %55 : vector<2x4xf32>
    %57 = arith.addf %51, %56 : vector<2x4xf32>
    %58 = vector.extract_strided_slice %46 {offsets = [0, 2], sizes = [2, 1], strides = [1, 1]} : vector<2x8xf32> to vector<2x1xf32>
    %59 = vector.extract_strided_slice %1 {offsets = [2, 0], sizes = [1, 4], strides = [1, 1]} : vector<8x4xf32> to vector<1x4xf32>
    %60 = vector.broadcast %58 : vector<2x1xf32> to vector<2x4xf32>
    %61 = vector.broadcast %59 : vector<1x4xf32> to vector<2x4xf32>
    %62 = arith.mulf %60, %61 : vector<2x4xf32>
    %63 = arith.addf %57, %62 : vector<2x4xf32>
    %64 = vector.extract_strided_slice %46 {offsets = [0, 3], sizes = [2, 1], strides = [1, 1]} : vector<2x8xf32> to vector<2x1xf32>
    %65 = vector.extract_strided_slice %1 {offsets = [3, 0], sizes = [1, 4], strides = [1, 1]} : vector<8x4xf32> to vector<1x4xf32>
    %66 = vector.broadcast %64 : vector<2x1xf32> to vector<2x4xf32>
    %67 = vector.broadcast %65 : vector<1x4xf32> to vector<2x4xf32>
    %68 = arith.mulf %66, %67 : vector<2x4xf32>
    %69 = arith.addf %63, %68 : vector<2x4xf32>
    %70 = vector.extract_strided_slice %46 {offsets = [0, 4], sizes = [2, 1], strides = [1, 1]} : vector<2x8xf32> to vector<2x1xf32>
    %71 = vector.extract_strided_slice %1 {offsets = [4, 0], sizes = [1, 4], strides = [1, 1]} : vector<8x4xf32> to vector<1x4xf32>
    %72 = vector.broadcast %70 : vector<2x1xf32> to vector<2x4xf32>
    %73 = vector.broadcast %71 : vector<1x4xf32> to vector<2x4xf32>
    %74 = arith.mulf %72, %73 : vector<2x4xf32>
    %75 = arith.addf %69, %74 : vector<2x4xf32>
    %76 = vector.extract_strided_slice %46 {offsets = [0, 5], sizes = [2, 1], strides = [1, 1]} : vector<2x8xf32> to vector<2x1xf32>
    %77 = vector.extract_strided_slice %1 {offsets = [5, 0], sizes = [1, 4], strides = [1, 1]} : vector<8x4xf32> to vector<1x4xf32>
    %78 = vector.broadcast %76 : vector<2x1xf32> to vector<2x4xf32>
    %79 = vector.broadcast %77 : vector<1x4xf32> to vector<2x4xf32>
    %80 = arith.mulf %78, %79 : vector<2x4xf32>
    %81 = arith.addf %75, %80 : vector<2x4xf32>
    %82 = vector.extract_strided_slice %46 {offsets = [0, 6], sizes = [2, 1], strides = [1, 1]} : vector<2x8xf32> to vector<2x1xf32>
    %83 = vector.extract_strided_slice %1 {offsets = [6, 0], sizes = [1, 4], strides = [1, 1]} : vector<8x4xf32> to vector<1x4xf32>
    %84 = vector.broadcast %82 : vector<2x1xf32> to vector<2x4xf32>
    %85 = vector.broadcast %83 : vector<1x4xf32> to vector<2x4xf32>
    %86 = arith.mulf %84, %85 : vector<2x4xf32>
    %87 = arith.addf %81, %86 : vector<2x4xf32>
    %88 = vector.extract_strided_slice %46 {offsets = [0, 7], sizes = [2, 1], strides = [1, 1]} : vector<2x8xf32> to vector<2x1xf32>
    %89 = vector.extract_strided_slice %1 {offsets = [7, 0], sizes = [1, 4], strides = [1, 1]} : vector<8x4xf32> to vector<1x4xf32>
    %90 = vector.broadcast %88 : vector<2x1xf32> to vector<2x4xf32>
    %91 = vector.broadcast %89 : vector<1x4xf32> to vector<2x4xf32>
    %92 = arith.mulf %90, %91 : vector<2x4xf32>
    %93 = arith.addf %87, %92 : vector<2x4xf32>
    %94 = vector.broadcast %3 : vector<1x4xf32> to vector<2x4xf32>
    %95 = arith.addf %93, %94 : vector<2x4xf32>
    %cst_20 = arith.constant 0.166666672 : f32
    %96 = vector.broadcast %cst_20 : f32 to vector<2x4xf32>
    %97 = arith.mulf %95, %96 : vector<2x4xf32>
    %cst_21 = arith.constant 5.000000e-01 : f32
    %98 = vector.broadcast %cst_21 : f32 to vector<2x4xf32>
    %99 = arith.addf %97, %98 : vector<2x4xf32>
    %cst_22 = arith.constant 0.000000e+00 : f32
    %cst_23 = arith.constant 1.000000e+00 : f32
    %100 = vector.broadcast %cst_22 : f32 to vector<2x4xf32>
    %101 = arith.maximumf %100, %99 : vector<2x4xf32>
    %102 = vector.broadcast %cst_23 : f32 to vector<2x4xf32>
    %103 = arith.minimumf %102, %101 : vector<2x4xf32>
    %c0_24 = arith.constant 0 : index
    %c0_25 = arith.constant 0 : index
    %104 = vector.load %arg1[%c0_24, %c0_25] : memref<2x1024xf32, #tpu.memory_space<vmem>>, vector<2x256xf32>
    %105 = vector.extract_strided_slice %103 {offsets = [0, 0], sizes = [2, 1], strides = [1, 1]} : vector<2x4xf32> to vector<2x1xf32>
    %106 = vector.broadcast %105 : vector<2x1xf32> to vector<2x256xf32>
    %107 = arith.mulf %106, %104 : vector<2x256xf32>
    %c0_26 = arith.constant 0 : index
    %c0_27 = arith.constant 0 : index
    %108 = vector.load %arg6[%c0_26, %c0_27] : memref<2x1024xf32, #tpu.memory_space<vmem>>, vector<2x256xf32>
    tpu.vector_store %arg6[%c0_26, %c0_27], %107 {strides = array<i32>} : memref<2x1024xf32, #tpu.memory_space<vmem>>, vector<2x256xf32>,
    %c0_28 = arith.constant 0 : index
    %c256_29 = arith.constant 256 : index
    %109 = vector.load %arg1[%c0_28, %c256_29] : memref<2x1024xf32, #tpu.memory_space<vmem>>, vector<2x256xf32>
    %110 = vector.extract_strided_slice %103 {offsets = [0, 1], sizes = [2, 1], strides = [1, 1]} : vector<2x4xf32> to vector<2x1xf32>
    %111 = vector.broadcast %110 : vector<2x1xf32> to vector<2x256xf32>
    %112 = arith.mulf %111, %109 : vector<2x256xf32>
    %c0_30 = arith.constant 0 : index
    %c256_31 = arith.constant 256 : index
    %113 = vector.load %arg6[%c0_30, %c256_31] : memref<2x1024xf32, #tpu.memory_space<vmem>>, vector<2x256xf32>
    tpu.vector_store %arg6[%c0_30, %c256_31], %112 {strides = array<i32>} : memref<2x1024xf32, #tpu.memory_space<vmem>>, vector<2x256xf32>,
    %c0_32 = arith.constant 0 : index
    %c512_33 = arith.constant 512 : index
    %114 = vector.load %arg1[%c0_32, %c512_33] : memref<2x1024xf32, #tpu.memory_space<vmem>>, vector<2x256xf32>
    %115 = vector.extract_strided_slice %103 {offsets = [0, 2], sizes = [2, 1], strides = [1, 1]} : vector<2x4xf32> to vector<2x1xf32>
    %116 = vector.broadcast %115 : vector<2x1xf32> to vector<2x256xf32>
    %117 = arith.mulf %116, %114 : vector<2x256xf32>
    %c0_34 = arith.constant 0 : index
    %c512_35 = arith.constant 512 : index
    %118 = vector.load %arg6[%c0_34, %c512_35] : memref<2x1024xf32, #tpu.memory_space<vmem>>, vector<2x256xf32>
    tpu.vector_store %arg6[%c0_34, %c512_35], %117 {strides = array<i32>} : memref<2x1024xf32, #tpu.memory_space<vmem>>, vector<2x256xf32>,
    %c0_36 = arith.constant 0 : index
    %c768_37 = arith.constant 768 : index
    %119 = vector.load %arg1[%c0_36, %c768_37] : memref<2x1024xf32, #tpu.memory_space<vmem>>, vector<2x256xf32>
    %120 = vector.extract_strided_slice %103 {offsets = [0, 3], sizes = [2, 1], strides = [1, 1]} : vector<2x4xf32> to vector<2x1xf32>
    %121 = vector.broadcast %120 : vector<2x1xf32> to vector<2x256xf32>
    %122 = arith.mulf %121, %119 : vector<2x256xf32>
    %c0_38 = arith.constant 0 : index
    %c768_39 = arith.constant 768 : index
    %123 = vector.load %arg6[%c0_38, %c768_39] : memref<2x1024xf32, #tpu.memory_space<vmem>>, vector<2x256xf32>
    tpu.vector_store %arg6[%c0_38, %c768_39], %122 {strides = array<i32>} : memref<2x1024xf32, #tpu.memory_space<vmem>>, vector<2x256xf32>,
    return
  }
  func.func @transform_0(%arg0: i32) -> (i32, i32) {
    %c0_i32 = arith.constant 0 : i32
    %c0_i32_0 = arith.constant 0 : i32
    return %arg0, %c0_i32 : i32, i32
  }
  func.func @transform_1(%arg0: i32) -> (i32, i32) {
    %c0_i32 = arith.constant 0 : i32
    %c0_i32_0 = arith.constant 0 : i32
    %c0_i32_1 = arith.constant 0 : i32
    return %c0_i32, %c0_i32_0 : i32, i32
  }
  func.func @transform_2(%arg0: i32) -> (i32, i32) {
    %c0_i32 = arith.constant 0 : i32
    %c0_i32_0 = arith.constant 0 : i32
    %c0_i32_1 = arith.constant 0 : i32
    return %c0_i32, %c0_i32_0 : i32, i32
  }
  func.func @transform_3(%arg0: i32) -> (i32, i32) {
    %c0_i32 = arith.constant 0 : i32
    %c0_i32_0 = arith.constant 0 : i32
    %c0_i32_1 = arith.constant 0 : i32
    return %c0_i32, %c0_i32_0 : i32, i32
  }
  func.func @transform_4(%arg0: i32) -> (i32, i32) {
    %c0_i32 = arith.constant 0 : i32
    %c0_i32_0 = arith.constant 0 : i32
    %c0_i32_1 = arith.constant 0 : i32
    return %c0_i32, %c0_i32_0 : i32, i32
  }
  func.func @transform_5(%arg0: i32) -> (i32, i32) {
    %c0_i32 = arith.constant 0 : i32
    %c0_i32_0 = arith.constant 0 : i32
    return %arg0, %c0_i32 : i32, i32
  }
}

</mosaic_0001>

<llo_original>
// kernel: tpu_custom_call.1
$region0: #{tpu_custom_call.1}
  #allocation0 [shape = 'u32[]', space=smem, size = 0x4, offset = 0x4, fixed_abs, tag = 'smem constant byte address 0x4 - core index']
  #allocation1 [shape = 'u32[144,128]{1,0:T(1,128)}', space=vmem, size = 0x12000, scoped, tag = 'internal scratch']
  %s0 = inlined_call_operand.hbm [shape: f32[2,1024], index: 0, kind: input, shape index: {}]
  %s1 = inlined_call_operand.vmem [shape: f32[4,8], index: 1, kind: input, shape index: {}]
  %s2 = inlined_call_operand.vmem [shape: f32[1,8], index: 2, kind: input, shape index: {}]
  %s3 = inlined_call_operand.vmem [shape: f32[8,4], index: 3, kind: input, shape index: {}]
  %s4 = inlined_call_operand.vmem [shape: f32[1,4], index: 4, kind: input, shape index: {}]
  %s5 = inlined_call_operand.hbm [shape: f32[2,1024], index: 5, kind: output, shape index: {}]
  %s6 = sld [smem:[#allocation0]]
  $region34: #{tpu_custom_call.1} parent=0
    _
  %s8 = ssub.s32 1, %s6
  %s9 = scalar_select 0, %s8, %s6
  $region1: #{tpu_custom_call.1} parent=0
    #allocation2 [shape = 'u8[8192]{0}', space=vmem, size = 0x2000, scoped, tag = 'input window, operand 0, single buffered']
    #allocation3 [shape = 's32[1]{0}', space=sflag, size = 0x4, scoped, tag = 'scoped memory for tpu_custom_call.1']
    #allocation4 [shape = 's32[1]{0}', space=sflag, size = 0x4, scoped, tag = 'scoped memory for tpu_custom_call.1']
    #allocation5 [shape = 'u8[8192]{0}', space=vmem, size = 0x2000, scoped, tag = 'output window, operand 0, single buffered']
    %10 = vsyncpa [#allocation3], 0
    %11 = vsyncpa [#allocation4], 0
    // Predicated region
    $region2: #{tpu_custom_call.1} parent=1 // pred_check
      _
    $region3: #{tpu_custom_call.1} parent=1 // pred_check_branch
      %13 = sbr.rel (0) target = $region5
    $region4: #{tpu_custom_call.1} parent=1 // pred_region
      %s15 = ssub.s32 256, 256
      %16 = vsyncadd [#allocation3], %s15
      %s18 = sshll.u32 [#allocation2], 4
      %s19 = int_to_ptr.vmem [resolvable:$true] %s18
      %21 = dma.hbm_to_vmem [thread:$0]  %s0, 256, %s19, [#allocation3]
    $region5: #{tpu_custom_call.1} parent=1 // pred_fallthru
      _
    // Predicated region
    $region6: #{tpu_custom_call.1} parent=1 // pred_check
      _
    $region7: #{tpu_custom_call.1} parent=1 // pred_check_branch
      %23 = sbr.rel (0) target = $region9
    $region8: #{tpu_custom_call.1} parent=1 // pred_region
      _
    $region9: #{tpu_custom_call.1} parent=1 // pred_fallthru
      _
    // Predicated region
    $region10: #{tpu_custom_call.1} parent=1 // pred_check
      _
    $region11: #{tpu_custom_call.1} parent=1 // pred_check_branch
      %25 = sbr.rel (0) target = $region13
    $region12: #{tpu_custom_call.1} parent=1 // pred_region
      _
    $region13: #{tpu_custom_call.1} parent=1 // pred_fallthru
      _
    // Predicated region
    $region14: #{tpu_custom_call.1} parent=1 // pred_check
      _
    $region15: #{tpu_custom_call.1} parent=1 // pred_check_branch
      %27 = sbr.rel (0) target = $region17
    $region16: #{tpu_custom_call.1} parent=1 // pred_region
      _
    $region17: #{tpu_custom_call.1} parent=1 // pred_fallthru
      _
    // Predicated region
    $region18: #{tpu_custom_call.1} parent=1 // pred_check
      _
    $region19: #{tpu_custom_call.1} parent=1 // pred_check_branch
      %29 = sbr.rel (0) target = $region21
    $region20: #{tpu_custom_call.1} parent=1 // pred_region
      _
    $region21: #{tpu_custom_call.1} parent=1 // pred_fallthru
      _
    // Predicated region
    $region22: #{tpu_custom_call.1} parent=1 // pred_check
      _
    $region23: #{tpu_custom_call.1} parent=1 // pred_check_branch
      %31 = sbr.rel (0) target = $region25
    $region24: #{tpu_custom_call.1} parent=1 // pred_region
      %32 = dma.done [#allocation3], 256
    $region25: #{tpu_custom_call.1} parent=1 // pred_fallthru
      _
    %v33 = vld [vmem:[%s1] sm:$0xf]
    %v34 = vld [vmem:[%s3] sm:$0xff]
    %v35 = vld [vmem:[%s2] sm:$0x1]
    %v36 = vld [vmem:[%s4] sm:$0x1]
    %v37 = vld [vmem:[#allocation2] sm:$0xf]
    %v40 = vunpack.c.l.s4 1983009808
    %v41 = vunpack.c.0.s8 %v40
    %v42 = vlaneseq
    %v43 = vshrl.u32 %v42, 7
    %v44 = vsub.s32 %v41, %v43
    %v45 = vrot.slane %v37, %v44
    %v46 = vcombine.high %v45, %v45
    %vm49 = vcmask 1041408
    %v50 = vsel %vm49, %v45, 0.0
    %v51 = vsel %vm49, %v46, 0.0
    %v52 = vadd.f32 %v50, %v51
    %53 = vadd.xlane.f32.xlu0 %v52
    %v54 = vpop.xlane.xlu0 %53
    %v55 = vmul.f32 %v54, 0.00390625
    %v56 = vlaneseq
    %v57 = vshrl.u32 %v56, 7
    %v58 = vsub.s32 0, %v57
    %v59 = vrot.slane %v33, %v58
    %v60 = vmul.f32 %v55, %v59
    %v61 = vld [vmem:[#allocation2 + $0x4] sm:$0xf]
    %v64 = vunpack.c.l.s4 1983009808
    %v65 = vunpack.c.0.s8 %v64
    %v66 = vlaneseq
    %v67 = vshrl.u32 %v66, 7
    %v68 = vsub.s32 %v65, %v67
    %v69 = vrot.slane %v61, %v68
    %v70 = vcombine.high %v69, %v69
    %v73 = vsel %vm49, %v69, 0.0
    %v74 = vsel %vm49, %v70, 0.0
    %v75 = vadd.f32 %v73, %v74
    %76 = vadd.xlane.f32.xlu0 %v75
    %v77 = vpop.xlane.xlu0 %76
    %v78 = vmul.f32 %v77, 0.00390625
    %v79 = vlaneseq
    %v80 = vshrl.u32 %v79, 7
    %v81 = vsub.s32 1, %v80
    %v82 = vrot.slane %v33, %v81
    %v83 = vmul.f32 %v78, %v82
    %v84 = vadd.f32 %v60, %v83
    %v85 = vld [vmem:[#allocation2 + $0x8] sm:$0xf]
    %v88 = vunpack.c.l.s4 1983009808
    %v89 = vunpack.c.0.s8 %v88
    %v90 = vlaneseq
    %v91 = vshrl.u32 %v90, 7
    %v92 = vsub.s32 %v89, %v91
    %v93 = vrot.slane %v85, %v92
    %v94 = vcombine.high %v93, %v93
    %v97 = vsel %vm49, %v93, 0.0
    %v98 = vsel %vm49, %v94, 0.0
    %v99 = vadd.f32 %v97, %v98
    %100 = vadd.xlane.f32.xlu0 %v99
    %v101 = vpop.xlane.xlu0 %100
    %v102 = vmul.f32 %v101, 0.00390625
    %v103 = vlaneseq
    %v104 = vshrl.u32 %v103, 7
    %v105 = vsub.s32 2, %v104
    %v106 = vrot.slane %v33, %v105
    %v107 = vmul.f32 %v102, %v106
    %v108 = vadd.f32 %v84, %v107
    %v109 = vld [vmem:[#allocation2 + $0xc] sm:$0xf]
    %v112 = vunpack.c.l.s4 1983009808
    %v113 = vunpack.c.0.s8 %v112
    %v114 = vlaneseq
    %v115 = vshrl.u32 %v114, 7
    %v116 = vsub.s32 %v113, %v115
    %v117 = vrot.slane %v109, %v116
    %v118 = vcombine.high %v117, %v117
    %v121 = vsel %vm49, %v117, 0.0
    %v122 = vsel %vm49, %v118, 0.0
    %v123 = vadd.f32 %v121, %v122
    %124 = vadd.xlane.f32.xlu0 %v123
    %v125 = vpop.xlane.xlu0 %124
    %v126 = vmul.f32 %v125, 0.00390625
    %v127 = vlaneseq
    %v128 = vshrl.u32 %v127, 7
    %v129 = vsub.s32 3, %v128
    %v130 = vrot.slane %v33, %v129
    %v131 = vmul.f32 %v126, %v130
    %v132 = vadd.f32 %v108, %v131
    %v134 = vlaneseq
    %v135 = vshrl.u32 %v134, 7
    %v136 = vsub.s32 0, %v135
    %v137 = vrot.slane %v35, %v136
    %v139 = vadd.f32 %v132, %v137
    %v140 = vmax.f32 %v139, 0.0
    %142 = vset.pattern.permute.xlu0 0
    %143 = vperm.xlu0 %142, %v140
    %v144 = vpop.permute.xlu0 %143
    %v146 = vlaneseq
    %v147 = vshrl.u32 %v146, 7
    %v148 = vsub.s32 0, %v147
    %v149 = vrot.slane %v34, %v148
    %v150 = vmul.f32 %v144, %v149
    %151 = vset.pattern.permute.xlu0 1
    %152 = vperm.xlu0 %151, %v140
    %v153 = vpop.permute.xlu0 %152
    %v155 = vlaneseq
    %v156 = vshrl.u32 %v155, 7
    %v157 = vsub.s32 1, %v156
    %v158 = vrot.slane %v34, %v157
    %v159 = vmul.f32 %v153, %v158
    %v160 = vadd.f32 %v150, %v159
    %161 = vset.pattern.permute.xlu0 2
    %162 = vperm.xlu0 %161, %v140
    %v163 = vpop.permute.xlu0 %162
    %v165 = vlaneseq
    %v166 = vshrl.u32 %v165, 7
    %v167 = vsub.s32 2, %v166
    %v168 = vrot.slane %v34, %v167
    %v169 = vmul.f32 %v163, %v168
    %v170 = vadd.f32 %v160, %v169
    %171 = vset.pattern.permute.xlu0 3
    %172 = vperm.xlu0 %171, %v140
    %v173 = vpop.permute.xlu0 %172
    %v175 = vlaneseq
    %v176 = vshrl.u32 %v175, 7
    %v177 = vsub.s32 3, %v176
    %v178 = vrot.slane %v34, %v177
    %v179 = vmul.f32 %v173, %v178
    %v180 = vadd.f32 %v170, %v179
    %181 = vset.pattern.permute.xlu0 4
    %182 = vperm.xlu0 %181, %v140
    %v183 = vpop.permute.xlu0 %182
    %v185 = vlaneseq
    %v186 = vshrl.u32 %v185, 7
    %v187 = vsub.s32 4, %v186
    %v188 = vrot.slane %v34, %v187
    %v189 = vmul.f32 %v183, %v188
    %v190 = vadd.f32 %v180, %v189
    %191 = vset.pattern.permute.xlu0 5
    %192 = vperm.xlu0 %191, %v140
    %v193 = vpop.permute.xlu0 %192
    %v195 = vlaneseq
    %v196 = vshrl.u32 %v195, 7
    %v197 = vsub.s32 5, %v196
    %v198 = vrot.slane %v34, %v197
    %v199 = vmul.f32 %v193, %v198
    %v200 = vadd.f32 %v190, %v199
    %201 = vset.pattern.permute.xlu0 6
    %202 = vperm.xlu0 %201, %v140
    %v203 = vpop.permute.xlu0 %202
    %v205 = vlaneseq
    %v206 = vshrl.u32 %v205, 7
    %v207 = vsub.s32 6, %v206
    %v208 = vrot.slane %v34, %v207
    %v209 = vmul.f32 %v203, %v208
    %v210 = vadd.f32 %v200, %v209
    %211 = vset.pattern.permute.xlu0 7
    %212 = vperm.xlu0 %211, %v140
    %v213 = vpop.permute.xlu0 %212
    %v215 = vlaneseq
    %v216 = vshrl.u32 %v215, 7
    %v217 = vsub.s32 7, %v216
    %v218 = vrot.slane %v34, %v217
    %v219 = vmul.f32 %v213, %v218
    %v220 = vadd.f32 %v210, %v219
    %v222 = vlaneseq
    %v223 = vshrl.u32 %v222, 7
    %v224 = vsub.s32 0, %v223
    %v225 = vrot.slane %v36, %v224
    %v227 = vadd.f32 %v220, %v225
    %v228 = vmul.f32 %v227, 0.16666667
    %v229 = vadd.f32 %v228, 0.5
    %v230 = vmax.f32 %v229, 0.0
    %v231 = vmin.f32 %v230, 1.0
    %233 = vset.pattern.permute.xlu0 0
    %234 = vperm.xlu0 %233, %v231
    %v235 = vpop.permute.xlu0 %234
    %v237 = vmul.f32 %v235, %v45
    %v238 = vmul.f32 %v235, %v46
    %v241 = vcombine.low %v237, %v238
    %v243 = vunpack.c.l.s4 1983009808
    %v244 = vunpack.c.0.s8 %v243
    %v245 = vlaneseq
    %v246 = vshrl.u32 %v245, 7
    %v247 = vsub.s32 %v244, %v246
    %v248 = vrot.slane %v241, %v247
    %250 = vst [vmem:[#allocation5] sm:$0xf] %v248
    %v251 = vld [vmem:[#allocation2 + $0x4] sm:$0xf]
    %252 = vset.pattern.permute.xlu0 1
    %253 = vperm.xlu0 %252, %v231
    %v254 = vpop.permute.xlu0 %253
    %v258 = vunpack.c.l.s4 1983009808
    %v259 = vunpack.c.0.s8 %v258
    %v260 = vlaneseq
    %v261 = vshrl.u32 %v260, 7
    %v262 = vsub.s32 %v259, %v261
    %v263 = vrot.slane %v251, %v262
    %v264 = vcombine.high %v263, %v263
    %v267 = vmul.f32 %v254, %v263
    %v268 = vmul.f32 %v254, %v264
    %v271 = vcombine.low %v267, %v268
    %v273 = vunpack.c.l.s4 1983009808
    %v274 = vunpack.c.0.s8 %v273
    %v275 = vlaneseq
    %v276 = vshrl.u32 %v275, 7
    %v277 = vsub.s32 %v274, %v276
    %v278 = vrot.slane %v271, %v277
    %280 = vst [vmem:[#allocation5 + $0x4] sm:$0xf] %v278
    %v281 = vld [vmem:[#allocation2 + $0x8] sm:$0xf]
    %282 = vset.pattern.permute.xlu0 2
    %283 = vperm.xlu0 %282, %v231
    %v284 = vpop.permute.xlu0 %283
    %v288 = vunpack.c.l.s4 1983009808
    %v289 = vunpack.c.0.s8 %v288
    %v290 = vlaneseq
    %v291 = vshrl.u32 %v290, 7
    %v292 = vsub.s32 %v289, %v291
    %v293 = vrot.slane %v281, %v292
    %v294 = vcombine.high %v293, %v293
    %v297 = vmul.f32 %v284, %v293
    %v298 = vmul.f32 %v284, %v294
    %v301 = vcombine.low %v297, %v298
    %v303 = vunpack.c.l.s4 1983009808
    %v304 = vunpack.c.0.s8 %v303
    %v305 = vlaneseq
    %v306 = vshrl.u32 %v305, 7
    %v307 = vsub.s32 %v304, %v306
    %v308 = vrot.slane %v301, %v307
    %310 = vst [vmem:[#allocation5 + $0x8] sm:$0xf] %v308
    %v311 = vld [vmem:[#allocation2 + $0xc] sm:$0xf]
    %312 = vset.pattern.permute.xlu0 3
    %313 = vperm.xlu0 %312, %v231
    %v314 = vpop.permute.xlu0 %313
    %v318 = vunpack.c.l.s4 1983009808
    %v319 = vunpack.c.0.s8 %v318
    %v320 = vlaneseq
    %v321 = vshrl.u32 %v320, 7
    %v322 = vsub.s32 %v319, %v321
    %v323 = vrot.slane %v311, %v322
    %v324 = vcombine.high %v323, %v323
    %v327 = vmul.f32 %v314, %v323
    %v328 = vmul.f32 %v314, %v324
    %v331 = vcombine.low %v327, %v328
    %v333 = vunpack.c.l.s4 1983009808
    %v334 = vunpack.c.0.s8 %v333
    %v335 = vlaneseq
    %v336 = vshrl.u32 %v335, 7
    %v337 = vsub.s32 %v334, %v336
    %v338 = vrot.slane %v331, %v337
    %340 = vst [vmem:[#allocation5 + $0xc] sm:$0xf] %v338
    // Predicated region
    $region26: #{tpu_custom_call.1} parent=1 // pred_check
      _
    $region27: #{tpu_custom_call.1} parent=1 // pred_check_branch
      %342 = sbr.rel (0) target = $region29
    $region28: #{tpu_custom_call.1} parent=1 // pred_region
      %s344 = ssub.s32 256, 256
      %345 = vsyncadd [#allocation4], %s344
      %s347 = sshll.u32 [#allocation5], 4
      %s348 = int_to_ptr.vmem [resolvable:$true] %s347
      %350 = dma.vmem_to_hbm [thread:$0]  %s348, 256, %s5, [#allocation4]
    $region29: #{tpu_custom_call.1} parent=1 // pred_fallthru
      _
    // Predicated region
    $region30: #{tpu_custom_call.1} parent=1 // pred_check
      _
    $region31: #{tpu_custom_call.1} parent=1 // pred_check_branch
      %352 = sbr.rel (0) target = $region33
    $region32: #{tpu_custom_call.1} parent=1 // pred_region
      %353 = dma.done [#allocation4], 256
    $region33: #{tpu_custom_call.1} parent=1 // pred_fallthru
      _
    %354 = vsyncpa [#allocation3], 1
    %355 = vsyncpa [#allocation4], 1

</llo_original>
